<compile_context>
chip_gen: v6e
topology: v6e:2x2x1
jax: 0.10.0
libtpu: 0.0.40
codegen_flags: <defaults>
</compile_context>

<pallas_src>
import functools

import jax
import jax.numpy as jnp
from jax import lax
from jax.experimental import pallas as pl
from jax.experimental.pallas import tpu as pltpu


def _round_up(x, m):
    return ((x + m - 1) // m) * m


def _auto_config():
    """Per-generation (tm, tn, tk, vmem_limit_bytes) defaults."""
    kind = ""
    try:
        kind = jax.devices()[0].device_kind.lower()
    except Exception:  # pragma: no cover - defensive
        pass
    if "v5" in kind:
        # v5e: ~240 FLOP/byte needed; 512-wide tiles already MXU-bound.
        return 512, 512, 1024, 64 * 1024 * 1024
    if "v6" in kind:
        # v6e: 128 MiB VMEM, ~714 FLOP/byte needed -> big tiles.
        return 1024, 1024, 1024, 100 * 1024 * 1024
    if "7" in kind:
        # v7x: 64 MiB VMEM, high HBM BW -> moderate tiles, <=48 MiB working set.
        return 512, 768, 1024, 48 * 1024 * 1024
    return 512, 512, 512, 48 * 1024 * 1024


# ---------------------------------------------------------------------------
# Pass 1: per-column output scale  scale[j] = g[j] / norm[j]
# ---------------------------------------------------------------------------
def _scale_kernel(wp_ref, wn_ref, g_ref, scale_ref, acc_ref, *, use_l2_wn):
    k = pl.program_id(1)

    @pl.when(k == 0)
    def _init():
        acc_ref[...] = jnp.zeros_like(acc_ref)

    wt = jnp.maximum(jnp.abs(wp_ref[...]), jnp.abs(wn_ref[...])).astype(jnp.float32)
    if use_l2_wn:
        acc_ref[...] += jnp.sum(wt * wt, axis=0, keepdims=True)
    else:
        acc_ref[...] += jnp.sum(wt, axis=0, keepdims=True)

    @pl.when(k == pl.num_programs(1) - 1)
    def _finalize():
        g = g_ref[...]
        # Clamp so zero-norm (and padded) columns yield a finite scale; padded
        # g lanes are 0, so the padded scale is exactly 0 (no inf/NaN).
        norm = jnp.maximum(acc_ref[...], 1e-30)
        if use_l2_wn:
            scale_ref[...] = g * lax.rsqrt(norm)
        else:
            scale_ref[...] = g / norm


def _column_scale(w_pos, w_neg, g, *, use_l2_wn, tn, tk, vmem_limit_bytes):
    K, N = w_pos.shape
    kernel = functools.partial(_scale_kernel, use_l2_wn=use_l2_wn)
    return pl.pallas_call(
        kernel,
        out_shape=jax.ShapeDtypeStruct((1, N), jnp.float32),
        grid_spec=pltpu.PrefetchScalarGridSpec(
            num_scalar_prefetch=0,
            grid=(N // tn, K // tk),
            in_specs=[
                pl.BlockSpec((tk, tn), lambda j, k: (k, j)),
                pl.BlockSpec((tk, tn), lambda j, k: (k, j)),
                pl.BlockSpec((1, tn), lambda j, k: (0, j)),
            ],
            out_specs=pl.BlockSpec((1, tn), lambda j, k: (0, j)),
            scratch_shapes=[pltpu.VMEM((1, tn), jnp.float32)],
        ),
        compiler_params=pltpu.CompilerParams(
            dimension_semantics=("parallel", "arbitrary"),
            vmem_limit_bytes=vmem_limit_bytes,
        ),
    )(w_pos, w_neg, g)


# ---------------------------------------------------------------------------
# Pass 2: Z = (X_pos @ W_pos + X_neg @ W_neg) * scale + bias
# ---------------------------------------------------------------------------
def _crelu_matmul_kernel(*refs, fused):
    if fused:
        h_ref, wp_ref, wn_ref, scale_ref, b_ref, o_ref, acc_ref = refs
    else:
        xp_ref, xn_ref, wp_ref, wn_ref, scale_ref, b_ref, o_ref, acc_ref = refs
    k = pl.program_id(2)

    @pl.when(k == 0)
    def _init():
        acc_ref[...] = jnp.zeros_like(acc_ref)

    if fused:
        h = h_ref[...]
        xp = jnp.maximum(h, 0.0)   # VPU; hides under MXU/DMA
        xn = jnp.maximum(-h, 0.0)
    else:
        xp = xp_ref[...]
        xn = xn_ref[...]

    # Single accumulator read-modify-write per k step (merged updates).
    acc_ref[...] += (
        jnp.dot(xp, wp_ref[...], preferred_element_type=jnp.float32)
        + jnp.dot(xn, wn_ref[...], preferred_element_type=jnp.float32)
    )

    @pl.when(k == pl.num_programs(2) - 1)
    def _finalize():
        o_ref[...] = (acc_ref[...] * scale_ref[...] + b_ref[...]).astype(o_ref.dtype)


def crelu_norm_linear(x_pos, x_neg, w_pos, w_neg, g, bias=None, *,
                      use_l2_wn=False, compute_dtype=jnp.bfloat16,
                      out_dtype=None, fuse_crelu=True,
                      tm=None, tn=None, tk=None, vmem_limit_bytes=None):
    """Pallas TPU implementation of CReLUNormLinear.forward (non-sparsify path).

    fuse_crelu=True assumes X_pos/X_neg are the two halves of a CReLU of a
    single pre-activation (the module's intended usage); this halves the
    activation HBM traffic.  Set fuse_crelu=False for arbitrary inputs.
    """
    M, K = x_pos.shape
    assert x_neg.shape == (M, K)
    K2, N = w_pos.shape
    assert K2 == K and w_neg.shape == (K, N)
    out_dtype = out_dtype if out_dtype is not None else x_pos.dtype
    f32 = jnp.float32

    tm_d, tn_d, tk_d, vmem_d = _auto_config()
    tm = tm_d if tm is None else tm
    tn = tn_d if tn is None else tn
    tk = tk_d if tk is None else tk
    vmem_limit_bytes = vmem_d if vmem_limit_bytes is None else vmem_limit_bytes

    # Effective tiles: lane-dense N tiles (multiple of 128), sublane-aligned
    # M/K, clamped to the padded problem size.
    tm_e = min(tm, _round_up(M, 8))
    tn_e = min(tn, _round_up(N, 128))
    tk_e = min(tk, _round_up(K, 128))
    M_p = _round_up(M, tm_e)
    N_p = _round_up(N, tn_e)
    K_p = _round_up(K, tk_e)

    def prep(a, rpad, cpad):
        # Cast to compute dtype in the wrapper (halves HBM streaming vs.
        # per-tile casts); pad only when the shape is not already aligned,
        # so aligned shapes avoid an extra memory pass.
        a = a.astype(compute_dtype)
        if rpad or cpad:
            a = jnp.pad(a, ((0, rpad), (0, cpad)))
        return a

    wp = prep(w_pos, K_p - K, N_p - N)
    wn = prep(w_neg, K_p - K, N_p - N)

    # g handles share=True (scalar gain) by broadcasting; pad with 0 so padded
    # output lanes get scale == 0 (no inf/NaN).
    g_full = jnp.broadcast_to(jnp.asarray(g, f32).reshape(1, -1), (1, N))
    if bias is None:
        b_full = jnp.zeros((1, N), f32)
    else:
        b_full = jnp.broadcast_to(jnp.asarray(bias, f32).reshape(1, -1), (1, N))
    if N_p > N:
        g_p = jnp.pad(g_full, ((0, 0), (0, N_p - N)))
        b_p = jnp.pad(b_full, ((0, 0), (0, N_p - N)))
    else:
        g_p, b_p = g_full, b_full

    # ---- Pass 1: per-column scale (consumes the already-cast weights). ----
    scale = _column_scale(wp, wn, g_p, use_l2_wn=use_l2_wn, tn=tn_e, tk=tk_e,
                          vmem_limit_bytes=vmem_limit_bytes)

    # ---- Pass 2: tiled matmul with f32 accumulator + epilogue scale/bias. --
    kernel = functools.partial(_crelu_matmul_kernel, fused=fuse_crelu)
    idx_x = lambda i, j, k: (i, k)
    idx_w = lambda i, j, k: (k, j)
    idx_v = lambda i, j, k: (0, j)

    if fuse_crelu:
        # Exact reconstruction of the pre-activation (disjoint support).
        h = x_pos.astype(compute_dtype) - x_neg.astype(compute_dtype)
        if (M_p > M) or (K_p > K):
            h = jnp.pad(h, ((0, M_p - M), (0, K_p - K)))
        x_inputs = (h,)
        x_specs = [pl.BlockSpec((tm_e, tk_e), idx_x)]
        act_bytes = h.size * h.dtype.itemsize
    else:
        xp = prep(x_pos, M_p - M, K_p - K)
        xn = prep(x_neg, M_p - M, K_p - K)
        x_inputs = (xp, xn)
        x_specs = [pl.BlockSpec((tm_e, tk_e), idx_x),
                   pl.BlockSpec((tm_e, tk_e), idx_x)]
        act_bytes = 2 * xp.size * xp.dtype.itemsize

    cb = jnp.dtype(compute_dtype).itemsize
    cost = pl.CostEstimate(
        flops=4 * M_p * K_p * N_p,
        transcendentals=0,
        bytes_accessed=(act_bytes + 2 * K_p * N_p * cb
                        + M_p * N_p * jnp.dtype(out_dtype).itemsize),
    )

    out = pl.pallas_call(
        kernel,
        out_shape=jax.ShapeDtypeStruct((M_p, N_p), out_dtype),
        grid_spec=pltpu.PrefetchScalarGridSpec(
            num_scalar_prefetch=0,
            grid=(M_p // tm_e, N_p // tn_e, K_p // tk_e),
            in_specs=x_specs + [
                pl.BlockSpec((tk_e, tn_e), idx_w),
                pl.BlockSpec((tk_e, tn_e), idx_w),
                pl.BlockSpec((1, tn_e), idx_v),   # scale
                pl.BlockSpec((1, tn_e), idx_v),   # bias
            ],
            out_specs=pl.BlockSpec((tm_e, tn_e), lambda i, j, k: (i, j)),
            scratch_shapes=[pltpu.VMEM((tm_e, tn_e), jnp.float32)],
        ),
        compiler_params=pltpu.CompilerParams(
            dimension_semantics=("parallel", "parallel", "arbitrary"),
            vmem_limit_bytes=vmem_limit_bytes,
        ),
        cost_estimate=cost,
    )(*x_inputs, wp, wn, scale, b_p)

    if (M_p > M) or (N_p > N):
        out = out[:M, :N]
    return out


# ---------------------------------------------------------------------------
# Reference / init helpers
# ---------------------------------------------------------------------------
def _orthogonal_init(key, rows, cols, dtype=jnp.float32):
    # Deterministic stand-in for nn.init.orthogonal_: QR of a gaussian matrix.
    a = jax.random.normal(key, (rows, cols), dtype=jnp.float32)
    q, r = jnp.linalg.qr(a)
    q = q * jnp.sign(jnp.diag(r))[None, :]
    return q.astype(dtype)


def _reference(x_pos, x_neg, w_pos, w_neg, g, bias, use_l2_wn=False):
    w_tilde = jnp.maximum(jnp.abs(w_pos), jnp.abs(w_neg))
    if use_l2_wn:
        norm = jnp.sqrt(jnp.sum(w_tilde ** 2, axis=0, keepdims=True))
    else:
        norm = jnp.sum(w_tilde, axis=0, keepdims=True)
    wp_n = g * w_pos / norm
    wn_n = g * w_neg / norm
    z = x_pos @ wp_n + x_neg @ wn_n
    if bias is not None:
        z = z + bias
    return z


if __name__ == "__main__":
    key = jax.random.PRNGKey(0)
    k_h, k_w, k_h2, k_wp2, k_wn2 = jax.random.split(key, 5)

    # ---- main test: lane-dense, multi-tile grid ----
    batch, input_size, output_size = 256, 512, 384
    h = jax.random.normal(k_h, (batch, input_size), jnp.float32)
    x_pos = jnp.maximum(h, 0.0)      # CReLU positive half
    x_neg = jnp.maximum(-h, 0.0)     # CReLU negative half
    w_pos = _orthogonal_init(k_w, input_size, output_size)   # orthogonal_
    w_neg = w_pos                    # module copies weight_pos into weight_neg
    g = jnp.ones((1, output_size), jnp.float32)
    bias = jnp.zeros((1, output_size), jnp.float32)

    ref = _reference(x_pos, x_neg, w_pos, w_neg, g, bias)

    # f32 MXU path, fused CReLU, small explicit tiles -> multi-tile grid.
    out_f32 = crelu_norm_linear(x_pos, x_neg, w_pos, w_neg, g, bias,
                                compute_dtype=jnp.float32,
                                tm=128, tn=256, tk=256)
    out_f32 = jax.block_until_ready(out_f32)
    assert out_f32.shape == ref.shape
    assert jnp.allclose(out_f32, ref, atol=2e-4, rtol=2e-4), "f32 mismatch"

    # bf16 MXU path with f32 accumulation, auto (per-generation) tiles.
    out_bf16 = crelu_norm_linear(x_pos, x_neg, w_pos, w_neg, g, bias,
                                 compute_dtype=jnp.bfloat16)
    out_bf16 = jax.block_until_ready(out_bf16)
    assert jnp.allclose(out_bf16, ref, atol=2e-2, rtol=2e-2), "bf16 mismatch"

    # Non-fused path (arbitrary X_pos / X_neg streams).
    out_nf = crelu_norm_linear(x_pos, x_neg, w_pos, w_neg, g, bias,
                               compute_dtype=jnp.float32, fuse_crelu=False,
                               tm=128, tn=256, tk=256)
    out_nf = jax.block_until_ready(out_nf)
    assert jnp.allclose(out_nf, ref, atol=2e-4, rtol=2e-4), "non-fused mismatch"

    # L2 weight-norm variant.
    ref_l2 = _reference(x_pos, x_neg, w_pos, w_neg, g, bias, use_l2_wn=True)
    out_l2 = crelu_norm_linear(x_pos, x_neg, w_pos, w_neg, g, bias,
                               use_l2_wn=True, compute_dtype=jnp.float32,
                               tm=128, tn=256, tk=256)
    out_l2 = jax.block_until_ready(out_l2)
    assert jnp.allclose(out_l2, ref_l2, atol=2e-4, rtol=2e-4), "l2 mismatch"

    # ---- ragged-shape test: wrapper padding, share=True gain, distinct
    #      pos/neg weights, nonzero bias ----
    b2, in2, out2 = 8, 32, 16
    h2 = jax.random.normal(k_h2, (b2, in2), jnp.float32)
    xp2, xn2 = jnp.maximum(h2, 0.0), jnp.maximum(-h2, 0.0)
    wp2 = _orthogonal_init(k_wp2, in2, out2)
    wn2 = _orthogonal_init(k_wn2, in2, out2)
    g2 = jnp.full((1, 1), 0.5, jnp.float32)
    bias2 = jax.random.normal(jax.random.PRNGKey(7), (1, out2), jnp.float32)
    ref2 = _reference(xp2, xn2, wp2, wn2, g2, bias2)
    out2_ = crelu_norm_linear(xp2, xn2, wp2, wn2, g2, bias2,
                              compute_dtype=jnp.float32)
    out2_ = jax.block_until_ready(out2_)
    assert out2_.shape == ref2.shape
    assert jnp.allclose(out2_, ref2, atol=2e-4, rtol=2e-4), "ragged mismatch"

    print("KERNEL_OK")
</pallas_src>

<mosaic_0001>
module attributes {stable_mosaic.version = 11 : i64} {
  func.func @_scale_kernel(%arg0: i32, %arg1: i32, %arg2: memref<256x256xf32, #tpu.memory_space<vmem>>, %arg3: memref<256x256xf32, #tpu.memory_space<vmem>>, %arg4: memref<1x256xf32, #tpu.memory_space<vmem>>, %arg5: memref<1x256xf32, #tpu.memory_space<vmem>>, %arg6: memref<1x256xf32, #tpu.memory_space<vmem>>) attributes {dimension_semantics = [#tpu.dimension_semantics<parallel>, #tpu.dimension_semantics<arbitrary>], iteration_bounds = array<i64: 2, 2>, scalar_prefetch = 0 : i64, scratch_operands = 1 : i64, tpu.core_type = #tpu.core_type<tc>, window_params = [{transform_indices = @transform_0, window_bounds = array<i64: 256, 256>}, {transform_indices = @transform_1, window_bounds = array<i64: 256, 256>}, {transform_indices = @transform_2, window_bounds = array<i64: 1, 256>}, {transform_indices = @transform_3, window_bounds = array<i64: 1, 256>}]} {
    %c0_i32 = arith.constant 0 : i32
    %0 = arith.cmpi eq, %arg1, %c0_i32 : i32
    %1 = arith.extui %0 : i1 to i32
    %c0_i32_0 = arith.constant 0 : i32
    %2 = arith.cmpi ne, %1, %c0_i32_0 : i32
    scf.if %2 {
      %cst_9 = arith.constant 0.000000e+00 : f32
      %16 = vector.broadcast %cst_9 : f32 to vector<1x256xf32>
      %c0_10 = arith.constant 0 : index
      %c0_11 = arith.constant 0 : index
      %17 = vector.load %arg6[%c0_10, %c0_11] : memref<1x256xf32, #tpu.memory_space<vmem>>, vector<1x256xf32>
      tpu.vector_store %arg6[%c0_10, %c0_11], %16 {strides = array<i32>} : memref<1x256xf32, #tpu.memory_space<vmem>>, vector<1x256xf32>,
    } else {
    }
    %c0 = arith.constant 0 : index
    %c0_1 = arith.constant 0 : index
    %3 = vector.load %arg2[%c0, %c0_1] : memref<256x256xf32, #tpu.memory_space<vmem>>, vector<256x256xf32>
    %4 = math.absf %3 : vector<256x256xf32>
    %c0_2 = arith.constant 0 : index
    %c0_3 = arith.constant 0 : index
    %5 = vector.load %arg3[%c0_2, %c0_3] : memref<256x256xf32, #tpu.memory_space<vmem>>, vector<256x256xf32>
    %6 = math.absf %5 : vector<256x256xf32>
    %7 = arith.maximumf %4, %6 : vector<256x256xf32>
    %c0_4 = arith.constant 0 : index
    %c0_5 = arith.constant 0 : index
    %8 = vector.load %arg6[%c0_4, %c0_5] : memref<1x256xf32, #tpu.memory_space<vmem>>, vector<1x256xf32>
    %cst = arith.constant dense<0.000000e+00> : vector<256xf32>
    %9 = vector.multi_reduction <add>, %7, %cst [0] : vector<256x256xf32> to vector<256xf32>
    %10 = vector.shape_cast %9 : vector<256xf32> to vector<1x256xf32>
    %11 = arith.addf %8, %10 : vector<1x256xf32>
    %c0_6 = arith.constant 0 : index
    %c0_7 = arith.constant 0 : index
    %12 = vector.load %arg6[%c0_6, %c0_7] : memref<1x256xf32, #tpu.memory_space<vmem>>, vector<1x256xf32>
    tpu.vector_store %arg6[%c0_6, %c0_7], %11 {strides = array<i32>} : memref<1x256xf32, #tpu.memory_space<vmem>>, vector<1x256xf32>,
    %c1_i32 = arith.constant 1 : i32
    %13 = arith.cmpi eq, %arg1, %c1_i32 : i32
    %14 = arith.extui %13 : i1 to i32
    %c0_i32_8 = arith.constant 0 : i32
    %15 = arith.cmpi ne, %14, %c0_i32_8 : i32
    scf.if %15 {
      %c0_9 = arith.constant 0 : index
      %c0_10 = arith.constant 0 : index
      %16 = vector.load %arg4[%c0_9, %c0_10] : memref<1x256xf32, #tpu.memory_space<vmem>>, vector<1x256xf32>
      %c0_11 = arith.constant 0 : index
      %c0_12 = arith.constant 0 : index
      %17 = vector.load %arg6[%c0_11, %c0_12] : memref<1x256xf32, #tpu.memory_space<vmem>>, vector<1x256xf32>
      %cst_13 = arith.constant 1.000000e-30 : f32
      %18 = vector.broadcast %cst_13 : f32 to vector<1x256xf32>
      %19 = arith.maximumf %17, %18 : vector<1x256xf32>
      %20 = arith.divf %16, %19 : vector<1x256xf32>
      %c0_14 = arith.constant 0 : index
      %c0_15 = arith.constant 0 : index
      %21 = vector.load %arg5[%c0_14, %c0_15] : memref<1x256xf32, #tpu.memory_space<vmem>>, vector<1x256xf32>
      tpu.vector_store %arg5[%c0_14, %c0_15], %20 {strides = array<i32>} : memref<1x256xf32, #tpu.memory_space<vmem>>, vector<1x256xf32>,
    } else {
    }
    return
  }
  func.func @transform_0(%arg0: i32, %arg1: i32) -> (i32, i32) {
    %c0_i32 = arith.constant 0 : i32
    return %arg1, %arg0 : i32, i32
  }
  func.func @transform_1(%arg0: i32, %arg1: i32) -> (i32, i32) {
    %c0_i32 = arith.constant 0 : i32
    return %arg1, %arg0 : i32, i32
  }
  func.func @transform_2(%arg0: i32, %arg1: i32) -> (i32, i32) {
    %c0_i32 = arith.constant 0 : i32
    %c0_i32_0 = arith.constant 0 : i32
    return %c0_i32, %arg0 : i32, i32
  }
  func.func @transform_3(%arg0: i32, %arg1: i32) -> (i32, i32) {
    %c0_i32 = arith.constant 0 : i32
    %c0_i32_0 = arith.constant 0 : i32
    return %c0_i32, %arg0 : i32, i32
  }
}

</mosaic_0001>

<llo_original>
// kernel: tpu_custom_call.1
$region0: #{tpu_custom_call.1}
  #allocation0 [shape = 'u32[]', space=smem, size = 0x4, offset = 0x4, fixed_abs, tag = 'smem constant byte address 0x4 - core index']
  #allocation1 [shape = 'u32[144,128]{1,0:T(1,128)}', space=vmem, size = 0x12000, scoped, tag = 'internal scratch']
  #allocation2 [shape = 'f32[1,256]{1,0:T(1,128)}', space=vmem, size = 0x400, scoped, tag = 'scratch operand']
  %s0 = inlined_call_operand.hbm [shape: f32[512,512], index: 0, kind: input, shape index: {}]
  %s1 = inlined_call_operand.hbm [shape: f32[512,512], index: 1, kind: input, shape index: {}]
  %s2 = inlined_call_operand.hbm [shape: f32[1,512], index: 2, kind: input, shape index: {}]
  %s3 = inlined_call_operand.hbm [shape: f32[1,512], index: 3, kind: output, shape index: {}]
  %s4 = sld [smem:[#allocation0]]
  $region65: #{tpu_custom_call.1} parent=0
    _
  %s6 = ssub.s32 1, %s4
  %s7 = scalar_select 0, %s6, %s4
  $region1: #{tpu_custom_call.1} parent=0
    #allocation3 [shape = 'u8[524288]{0}', space=vmem, size = 0x80000, scoped, tag = 'input window, operand 0']
    #allocation4 [shape = 's32[2]{0}', space=sflag, size = 0x8, scoped, tag = 'scoped memory for tpu_custom_call.1']
    #allocation5 [shape = 's32[2]{0}', space=sflag, size = 0x8, scoped, tag = 'scoped memory for tpu_custom_call.1']
    #allocation6 [shape = 'u8[524288]{0}', space=vmem, size = 0x80000, scoped, tag = 'input window, operand 1']
    #allocation7 [shape = 's32[2]{0}', space=sflag, size = 0x8, scoped, tag = 'scoped memory for tpu_custom_call.1']
    #allocation8 [shape = 'u8[2048]{0}', space=vmem, size = 0x800, scoped, tag = 'input window, operand 2']
    #allocation9 [shape = 'u8[2048]{0}', space=vmem, size = 0x800, scoped, tag = 'output window, operand 0']
    %8 = vsyncpa [#allocation4], 0
    %s9 = scalar_lea.sflag [#allocation4], 1
    %10 = vsyncpa %s9, 0
    %11 = vsyncpa [#allocation7], 0
    %s12 = scalar_lea.sflag [#allocation7], 1
    %13 = vsyncpa %s12, 0
    %14 = vsyncpa [#allocation5], 0
    %s15 = scalar_lea.sflag [#allocation5], 1
    %16 = vsyncpa %s15, 0
    loop: start=0, step=1, limit=6
    $region2: #{tpu_custom_call.1} parent=1 // loop_pre_header
      _
    $region3: #{tpu_custom_call.1} parent=1 // loop_header
      %s18 = sphi 0, %s22
      %p19 = scmp.ge.s32.totalorder %s18, 6
      %s25 = sphi 0, %s37
      %s26 = sphi 0, %s33
      %s27 = sphi 0, %s25
      %s28 = sphi 0, %s26
      %s29 = sphi 0, %s27
      %s30 = sphi 0, %s28
      %s42 = sphi 0, %s44
      %s45 = sphi 0, %s42
      %s46 = sphi 0, %s45
      %s62 = sphi 0, %s46
      %s70 = sphi 0, %s72
      %s73 = sphi 0, %s70
      %s74 = sphi 0, %s73
      %s90 = sphi 0, %s74
      %s96 = sphi 0, %s98
      %s99 = sphi 0, %s96
      %s100 = sphi 0, %s99
      %s116 = sphi 0, %s100
      %s122 = sphi 0, %s124
      %s125 = sphi 0, %s122
      %s126 = sphi 0, %s125
      %s142 = sphi 0, %s126
    $region4: #{tpu_custom_call.1} parent=1 // loop_header_branch
      %21 = sbr.rel (%p19) target = $region8
    $region5: #{tpu_custom_call.1} parent=1 // loop_body
      %s23 = ssub.s32 %s18, 1
      %s24 = ssub.s32 %s18, 2
      %s31 = sadd.s32 1, %s26
      %p32 = scmp.ge.s32.totalorder %s31, 2
      %s33 = scalar_select %p32, 0, %s31
      %s34 = sadd.s32 1, %s25
      %s35 = scalar_select %p32, %s34, %s25
      %p36 = scmp.ge.s32.totalorder %s35, 2
      %s37 = scalar_select %p36, 0, %s35
      %s38 = ssub.s32 %s26, %s33
      %s39 = ssub.s32 %s25, %s37
      %s40 = sor.u32 %s38, %s39
      %p41 = scmp.eq.s32.totalorder %s40, 0
      %s43 = sadd.s32 %s42, 1
      %s44 = scalar_select %p41, %s42, %s43
      %p47 = pneg %p41
      %p48 = scmp.eq.s32.totalorder %s18, 3
      %p49 = por %p47, %p48
      %p50 = scmp.ne.s32.totalorder %s42, %s45
      %p51 = scmp.eq.s32.totalorder %s18, 0
      %p52 = por %p50, %p51
      %p53 = scmp.ne.s32.totalorder %s42, %s45
      %p54 = scmp.eq.s32.totalorder %s23, 3
      %p55 = por %p53, %p54
      %p56 = scmp.ne.s32.totalorder %s45, %s46
      %p57 = scmp.eq.s32.totalorder %s23, 0
      %p58 = por %p56, %p57
      %p59 = scmp.ne.s32.totalorder %s45, %s46
      %p60 = scmp.eq.s32.totalorder %s24, 3
      %p61 = por %p59, %p60
      %p63 = scmp.ne.s32.totalorder %s46, %s62
      %p64 = scmp.eq.s32.totalorder %s24, 0
      %p65 = por %p63, %p64
      %s66 = ssub.s32 %s26, %s33
      %s67 = ssub.s32 %s25, %s37
      %s68 = sor.u32 %s66, %s67
      %p69 = scmp.eq.s32.totalorder %s68, 0
      %s71 = sadd.s32 %s70, 1
      %s72 = scalar_select %p69, %s70, %s71
      %p75 = pneg %p69
      %p76 = scmp.eq.s32.totalorder %s18, 3
      %p77 = por %p75, %p76
      %p78 = scmp.ne.s32.totalorder %s70, %s73
      %p79 = scmp.eq.s32.totalorder %s18, 0
      %p80 = por %p78, %p79
      %p81 = scmp.ne.s32.totalorder %s70, %s73
      %p82 = scmp.eq.s32.totalorder %s23, 3
      %p83 = por %p81, %p82
      %p84 = scmp.ne.s32.totalorder %s73, %s74
      %p85 = scmp.eq.s32.totalorder %s23, 0
      %p86 = por %p84, %p85
      %p87 = scmp.ne.s32.totalorder %s73, %s74
      %p88 = scmp.eq.s32.totalorder %s24, 3
      %p89 = por %p87, %p88
      %p91 = scmp.ne.s32.totalorder %s74, %s90
      %p92 = scmp.eq.s32.totalorder %s24, 0
      %p93 = por %p91, %p92
      %s94 = ssub.s32 %s25, %s37
      %p95 = scmp.eq.s32.totalorder %s94, 0
      %s97 = sadd.s32 %s96, 1
      %s98 = scalar_select %p95, %s96, %s97
      %p101 = pneg %p95
      %p102 = scmp.eq.s32.totalorder %s18, 3
      %p103 = por %p101, %p102
      %p104 = scmp.ne.s32.totalorder %s96, %s99
      %p105 = scmp.eq.s32.totalorder %s18, 0
      %p106 = por %p104, %p105
      %p107 = scmp.ne.s32.totalorder %s96, %s99
      %p108 = scmp.eq.s32.totalorder %s23, 3
      %p109 = por %p107, %p108
      %p110 = scmp.ne.s32.totalorder %s99, %s100
      %p111 = scmp.eq.s32.totalorder %s23, 0
      %p112 = por %p110, %p111
      %p113 = scmp.ne.s32.totalorder %s99, %s100
      %p114 = scmp.eq.s32.totalorder %s24, 3
      %p115 = por %p113, %p114
      %p117 = scmp.ne.s32.totalorder %s100, %s116
      %p118 = scmp.eq.s32.totalorder %s24, 0
      %p119 = por %p117, %p118
      %s120 = ssub.s32 %s25, %s37
      %p121 = scmp.eq.s32.totalorder %s120, 0
      %s123 = sadd.s32 %s122, 1
      %s124 = scalar_select %p121, %s122, %s123
      %p127 = pneg %p121
      %p128 = scmp.eq.s32.totalorder %s18, 3
      %p129 = por %p127, %p128
      %p130 = scmp.ne.s32.totalorder %s122, %s125
      %p131 = scmp.eq.s32.totalorder %s18, 0
      %p132 = por %p130, %p131
      %p133 = scmp.ne.s32.totalorder %s122, %s125
      %p134 = scmp.eq.s32.totalorder %s23, 3
      %p135 = por %p133, %p134
      %p136 = scmp.ne.s32.totalorder %s125, %s126
      %p137 = scmp.eq.s32.totalorder %s23, 0
      %p138 = por %p136, %p137
      %p139 = scmp.ne.s32.totalorder %s125, %s126
      %p140 = scmp.eq.s32.totalorder %s24, 3
      %p141 = por %p139, %p140
      %p143 = scmp.ne.s32.totalorder %s126, %s142
      %p144 = scmp.eq.s32.totalorder %s24, 0
      %p145 = por %p143, %p144
      %p146 = scmp.le.s32.totalorder 1, %s18
      %p147 = scmp.lt.s32.totalorder %s18, 5
      %p148 = pnand %p146, %p147
      %p149 = pneg %p148
      // Predicated region
      $region9: #{tpu_custom_call.1} parent=5 // pred_check
        _
      $region10: #{tpu_custom_call.1} parent=5 // pred_check_branch
        %151 = sbr.rel (%p148) target = $region12
      $region11: #{tpu_custom_call.1} parent=5 // pred_region
        %s152 = ssub.s32 %s18, 1
      $region12: #{tpu_custom_call.1} parent=5 // pred_fallthru
        _
      %p153 = scmp.lt.s32.totalorder %s18, 4
      // Predicated region
      $region13: #{tpu_custom_call.1} parent=5 // pred_check
        %p154 = pneg %p153
      $region14: #{tpu_custom_call.1} parent=5 // pred_check_branch
        %156 = sbr.rel (%p154) target = $region16
      $region15: #{tpu_custom_call.1} parent=5 // pred_region
        // Predicated region
        $region17: #{tpu_custom_call.1} parent=15 // pred_check
          %p157 = pneg %p52
        $region18: #{tpu_custom_call.1} parent=15 // pred_check_branch
          %159 = sbr.rel (%p157) target = $region20
        $region19: #{tpu_custom_call.1} parent=15 // pred_region
          %s160 = sand.u32 %s42, 1
          %s161 = scalar_lea.sflag [#allocation4], %s160
          %s162 = sand.u32 %s42, 1
          %s163 = smul.addr %s162, 512
          %s164 = scalar_lea.vmem [#allocation3], %s163
          %s165 = smul.u32 32, %s26
          %s166 = smul.u32 2, %s25
          %s168 = ssub.s32 8192, 8192
          %169 = vsyncadd %s161, %s168
          %s170 = smul.addr %s165, 4
          %s171 = sadd.s32 %s166, %s170
          %s172 = smul.addr %s171, 128
          %s173 = scalar_lea.hbm %s0, %s172
          %s174 = sshll.u32 %s164, 4
          %s175 = int_to_ptr.vmem [resolvable:$true] %s174
          %180 = dma.hbm_to_vmem [thread:$0]  %s173, 8192, %s175, %s161, 512, 256, 16
        $region20: #{tpu_custom_call.1} parent=15 // pred_fallthru
          _
        // Predicated region
        $region21: #{tpu_custom_call.1} parent=15 // pred_check
          %p181 = pneg %p80
        $region22: #{tpu_custom_call.1} parent=15 // pred_check_branch
          %183 = sbr.rel (%p181) target = $region24
        $region23: #{tpu_custom_call.1} parent=15 // pred_region
          %s184 = sand.u32 %s18, 1
          %s185 = scalar_lea.sflag [#allocation7], %s184
          %s186 = sand.u32 %s70, 1
          %s187 = smul.addr %s186, 512
          %s188 = scalar_lea.vmem [#allocation6], %s187
          %s189 = smul.u32 32, %s26
          %s190 = smul.u32 2, %s25
          %s192 = ssub.s32 8192, 8192
          %193 = vsyncadd %s185, %s192
          %s194 = smul.addr %s189, 4
          %s195 = sadd.s32 %s190, %s194
          %s196 = smul.addr %s195, 128
          %s197 = scalar_lea.hbm %s1, %s196
          %s198 = sshll.u32 %s188, 4
          %s199 = int_to_ptr.vmem [resolvable:$true] %s198
          %204 = dma.hbm_to_vmem [thread:$0]  %s197, 8192, %s199, %s185, 512, 256, 16
        $region24: #{tpu_custom_call.1} parent=15 // pred_fallthru
          _
        // Predicated region
        $region25: #{tpu_custom_call.1} parent=15 // pred_check
          %p205 = pneg %p106
        $region26: #{tpu_custom_call.1} parent=15 // pred_check_branch
          %207 = sbr.rel (%p205) target = $region28
        $region27: #{tpu_custom_call.1} parent=15 // pred_region
          %s208 = sand.u32 %s18, 1
          %s209 = scalar_lea.sflag [#allocation7], %s208
          %s210 = sand.u32 %s96, 1
          %s211 = smul.addr %s210, 2
          %s212 = scalar_lea.vmem [#allocation8], %s211
          %s213 = smul.u32 2, %s25
          %s215 = ssub.s32 32, 32
          %216 = vsyncadd %s209, %s215
          %s217 = smul.addr %s213, 16
          %s218 = scalar_lea.hbm %s2, %s217
          %s220 = sshll.u32 %s212, 4
          %s221 = int_to_ptr.vmem [resolvable:$true] %s220
          %223 = dma.hbm_to_vmem [thread:$0]  %s218, 32, %s221, %s209
        $region28: #{tpu_custom_call.1} parent=15 // pred_fallthru
          _
      $region16: #{tpu_custom_call.1} parent=5 // pred_fallthru
        _
      %p224 = scmp.le.s32.totalorder 1, %s18
      %p225 = scmp.lt.s32.totalorder %s18, 5
      %p226 = pnand %p224, %p225
      %p227 = pneg %p226
      // Predicated region
      $region29: #{tpu_custom_call.1} parent=5 // pred_check
        _
      $region30: #{tpu_custom_call.1} parent=5 // pred_check_branch
        %229 = sbr.rel (%p226) target = $region32
      $region31: #{tpu_custom_call.1} parent=5 // pred_region
        %s230 = ssub.s32 %s18, 1
        %s231 = sand.u32 %s45, 1
        %s232 = scalar_lea.sflag [#allocation4], %s231
        %s233 = sand.u32 %s45, 1
        %s234 = smul.addr %s233, 512
        %s235 = scalar_lea.vmem [#allocation3], %s234
        // Predicated region
        $region33: #{tpu_custom_call.1} parent=31 // pred_check
          %p236 = pneg %p58
        $region34: #{tpu_custom_call.1} parent=31 // pred_check_branch
          %238 = sbr.rel (%p236) target = $region36
        $region35: #{tpu_custom_call.1} parent=31 // pred_region
          %239 = dma.done %s232, 8192
        $region36: #{tpu_custom_call.1} parent=31 // pred_fallthru
          _
        %s240 = sand.u32 %s23, 1
        %s241 = scalar_lea.sflag [#allocation7], %s240
        %s242 = sand.u32 %s73, 1
        %s243 = smul.addr %s242, 512
        %s244 = scalar_lea.vmem [#allocation6], %s243
        // Predicated region
        $region37: #{tpu_custom_call.1} parent=31 // pred_check
          %p245 = pneg %p86
        $region38: #{tpu_custom_call.1} parent=31 // pred_check_branch
          %247 = sbr.rel (%p245) target = $region40
        $region39: #{tpu_custom_call.1} parent=31 // pred_region
          %248 = dma.done %s241, 8192
        $region40: #{tpu_custom_call.1} parent=31 // pred_fallthru
          _
        %s249 = sand.u32 %s23, 1
        %s250 = scalar_lea.sflag [#allocation7], %s249
        %s251 = sand.u32 %s99, 1
        %s252 = smul.addr %s251, 2
        %s253 = scalar_lea.vmem [#allocation8], %s252
        // Predicated region
        $region41: #{tpu_custom_call.1} parent=31 // pred_check
          %p254 = pneg %p112
        $region42: #{tpu_custom_call.1} parent=31 // pred_check_branch
          %256 = sbr.rel (%p254) target = $region44
        $region43: #{tpu_custom_call.1} parent=31 // pred_region
          %257 = dma.done %s250, 32
        $region44: #{tpu_custom_call.1} parent=31 // pred_fallthru
          _
        %s258 = sand.u32 %s45, 1
        %s259 = scalar_lea.sflag [#allocation4], %s258
        %s260 = sand.u32 %s45, 1
        %s261 = smul.addr %s260, 512
        %s262 = scalar_lea.vmem [#allocation3], %s261
        %p263 = pneg %p58
        %p264 = pneg %p55
        %s265 = sand.u32 %s23, 1
        %s266 = scalar_lea.sflag [#allocation7], %s265
        %s267 = sand.u32 %s73, 1
        %s268 = smul.addr %s267, 512
        %s269 = scalar_lea.vmem [#allocation6], %s268
        %p270 = pneg %p86
        %p271 = pneg %p83
        %s272 = sand.u32 %s23, 1
        %s273 = scalar_lea.sflag [#allocation7], %s272
        %s274 = sand.u32 %s99, 1
        %s275 = smul.addr %s274, 2
        %s276 = scalar_lea.vmem [#allocation8], %s275
        %p277 = pneg %p112
        %p278 = pneg %p109
        %p279 = pneg %p138
        %p280 = pneg %p135
        %s281 = sand.u32 %s125, 1
        %s282 = scalar_lea.sflag [#allocation5], %s281
        %s283 = sand.u32 %s125, 1
        %s284 = smul.addr %s283, 2
        %s285 = scalar_lea.vmem [#allocation9], %s284
        %s286 = smul.u32 32, %s28
        %s287 = smul.u32 2, %s27
        %s288 = smul.u32 32, %s28
        %s289 = smul.u32 2, %s27
        %s290 = smul.u32 2, %s27
        %s291 = smul.u32 2, %s27
        %p292 = scmp.eq.s32.totalorder %s28, 0
        // Predicated region
        $region45: #{tpu_custom_call.1} parent=31 // pred_check
          %p293 = pneg %p292
        $region46: #{tpu_custom_call.1} parent=31 // pred_check_branch
          %295 = sbr.rel (%p293) target = $region48
        $region47: #{tpu_custom_call.1} parent=31 // pred_region
          %v296 = vlaneseq
          %vm297 = vcmp.ge.s32.totalorder %v296, 0
          %vm298 = vcmp.lt.s32.totalorder %v296, 256
          %vm299 = vmand %vm297, %vm298
          %300 = vst.msk [vmem:[#allocation2] sm:$0x3] %vm299, 0.0
        $region48: #{tpu_custom_call.1} parent=31 // pred_fallthru
          _
        %v301 = vld [vmem:[%s235] sm:$0xff]
        %v302 = vld [vmem:[%s235 + $0x8] sm:$0xff]
        %v303 = vld [vmem:[%s235 + $0x10] sm:$0xff]
        %v304 = vld [vmem:[%s235 + $0x18] sm:$0xff]
        %v305 = vld [vmem:[%s235 + $0x20] sm:$0xff]
        %v306 = vld [vmem:[%s235 + $0x28] sm:$0xff]
        %v307 = vld [vmem:[%s235 + $0x30] sm:$0xff]
        %v308 = vld [vmem:[%s235 + $0x38] sm:$0xff]
        %v309 = vld [vmem:[%s235 + $0x40] sm:$0xff]
        %v310 = vld [vmem:[%s235 + $0x48] sm:$0xff]
        %v311 = vld [vmem:[%s235 + $0x50] sm:$0xff]
        %v312 = vld [vmem:[%s235 + $0x58] sm:$0xff]
        %v313 = vld [vmem:[%s235 + $0x60] sm:$0xff]
        %v314 = vld [vmem:[%s235 + $0x68] sm:$0xff]
        %v315 = vld [vmem:[%s235 + $0x70] sm:$0xff]
        %v316 = vld [vmem:[%s235 + $0x78] sm:$0xff]
        %v317 = vld [vmem:[%s235 + $0x80] sm:$0xff]
        %v318 = vld [vmem:[%s235 + $0x88] sm:$0xff]
        %v319 = vld [vmem:[%s235 + $0x90] sm:$0xff]
        %v320 = vld [vmem:[%s235 + $0x98] sm:$0xff]
        %v321 = vld [vmem:[%s235 + $0xa0] sm:$0xff]
        %v322 = vld [vmem:[%s235 + $0xa8] sm:$0xff]
        %v323 = vld [vmem:[%s235 + $0xb0] sm:$0xff]
        %v324 = vld [vmem:[%s235 + $0xb8] sm:$0xff]
        %v325 = vld [vmem:[%s235 + $0xc0] sm:$0xff]
        %v326 = vld [vmem:[%s235 + $0xc8] sm:$0xff]
        %v327 = vld [vmem:[%s235 + $0xd0] sm:$0xff]
        %v328 = vld [vmem:[%s235 + $0xd8] sm:$0xff]
        %v329 = vld [vmem:[%s235 + $0xe0] sm:$0xff]
        %v330 = vld [vmem:[%s235 + $0xe8] sm:$0xff]
        %v331 = vld [vmem:[%s235 + $0xf0] sm:$0xff]
        %v332 = vld [vmem:[%s235 + $0xf8] sm:$0xff]
        %v333 = vld [vmem:[%s235 + $0x100] sm:$0xff]
        %v334 = vld [vmem:[%s235 + $0x108] sm:$0xff]
        %v335 = vld [vmem:[%s235 + $0x110] sm:$0xff]
        %v336 = vld [vmem:[%s235 + $0x118] sm:$0xff]
        %v337 = vld [vmem:[%s235 + $0x120] sm:$0xff]
        %v338 = vld [vmem:[%s235 + $0x128] sm:$0xff]
        %v339 = vld [vmem:[%s235 + $0x130] sm:$0xff]
        %v340 = vld [vmem:[%s235 + $0x138] sm:$0xff]
        %v341 = vld [vmem:[%s235 + $0x140] sm:$0xff]
        %v342 = vld [vmem:[%s235 + $0x148] sm:$0xff]
        %v343 = vld [vmem:[%s235 + $0x150] sm:$0xff]
        %v344 = vld [vmem:[%s235 + $0x158] sm:$0xff]
        %v345 = vld [vmem:[%s235 + $0x160] sm:$0xff]
        %v346 = vld [vmem:[%s235 + $0x168] sm:$0xff]
        %v347 = vld [vmem:[%s235 + $0x170] sm:$0xff]
        %v348 = vld [vmem:[%s235 + $0x178] sm:$0xff]
        %v349 = vld [vmem:[%s235 + $0x180] sm:$0xff]
        %v350 = vld [vmem:[%s235 + $0x188] sm:$0xff]
        %v351 = vld [vmem:[%s235 + $0x190] sm:$0xff]
        %v352 = vld [vmem:[%s235 + $0x198] sm:$0xff]
        %v353 = vld [vmem:[%s235 + $0x1a0] sm:$0xff]
        %v354 = vld [vmem:[%s235 + $0x1a8] sm:$0xff]
        %v355 = vld [vmem:[%s235 + $0x1b0] sm:$0xff]
        %v356 = vld [vmem:[%s235 + $0x1b8] sm:$0xff]
        %v357 = vld [vmem:[%s235 + $0x1c0] sm:$0xff]
        %v358 = vld [vmem:[%s235 + $0x1c8] sm:$0xff]
        %v359 = vld [vmem:[%s235 + $0x1d0] sm:$0xff]
        %v360 = vld [vmem:[%s235 + $0x1d8] sm:$0xff]
        %v361 = vld [vmem:[%s235 + $0x1e0] sm:$0xff]
        %v362 = vld [vmem:[%s235 + $0x1e8] sm:$0xff]
        %v363 = vld [vmem:[%s235 + $0x1f0] sm:$0xff]
        %v364 = vld [vmem:[%s235 + $0x1f8] sm:$0xff]
        %v365 = vand.u32 2147483647, %v301
        %v366 = vand.u32 2147483647, %v302
        %v367 = vand.u32 2147483647, %v303
        %v368 = vand.u32 2147483647, %v304
        %v369 = vand.u32 2147483647, %v305
        %v370 = vand.u32 2147483647, %v306
        %v371 = vand.u32 2147483647, %v307
        %v372 = vand.u32 2147483647, %v308
        %v373 = vand.u32 2147483647, %v309
        %v374 = vand.u32 2147483647, %v310
        %v375 = vand.u32 2147483647, %v311
        %v376 = vand.u32 2147483647, %v312
        %v377 = vand.u32 2147483647, %v313
        %v378 = vand.u32 2147483647, %v314
        %v379 = vand.u32 2147483647, %v315
        %v380 = vand.u32 2147483647, %v316
        %v381 = vand.u32 2147483647, %v317
        %v382 = vand.u32 2147483647, %v318
        %v383 = vand.u32 2147483647, %v319
        %v384 = vand.u32 2147483647, %v320
        %v385 = vand.u32 2147483647, %v321
        %v386 = vand.u32 2147483647, %v322
        %v387 = vand.u32 2147483647, %v323
        %v388 = vand.u32 2147483647, %v324
        %v389 = vand.u32 2147483647, %v325
        %v390 = vand.u32 2147483647, %v326
        %v391 = vand.u32 2147483647, %v327
        %v392 = vand.u32 2147483647, %v328
        %v393 = vand.u32 2147483647, %v329
        %v394 = vand.u32 2147483647, %v330
        %v395 = vand.u32 2147483647, %v331
        %v396 = vand.u32 2147483647, %v332
        %v397 = vand.u32 2147483647, %v333
        %v398 = vand.u32 2147483647, %v334
        %v399 = vand.u32 2147483647, %v335
        %v400 = vand.u32 2147483647, %v336
        %v401 = vand.u32 2147483647, %v337
        %v402 = vand.u32 2147483647, %v338
        %v403 = vand.u32 2147483647, %v339
        %v404 = vand.u32 2147483647, %v340
        %v405 = vand.u32 2147483647, %v341
        %v406 = vand.u32 2147483647, %v342
        %v407 = vand.u32 2147483647, %v343
        %v408 = vand.u32 2147483647, %v344
        %v409 = vand.u32 2147483647, %v345
        %v410 = vand.u32 2147483647, %v346
        %v411 = vand.u32 2147483647, %v347
        %v412 = vand.u32 2147483647, %v348
        %v413 = vand.u32 2147483647, %v349
        %v414 = vand.u32 2147483647, %v350
        %v415 = vand.u32 2147483647, %v351
        %v416 = vand.u32 2147483647, %v352
        %v417 = vand.u32 2147483647, %v353
        %v418 = vand.u32 2147483647, %v354
        %v419 = vand.u32 2147483647, %v355
        %v420 = vand.u32 2147483647, %v356
        %v421 = vand.u32 2147483647, %v357
        %v422 = vand.u32 2147483647, %v358
        %v423 = vand.u32 2147483647, %v359
        %v424 = vand.u32 2147483647, %v360
        %v425 = vand.u32 2147483647, %v361
        %v426 = vand.u32 2147483647, %v362
        %v427 = vand.u32 2147483647, %v363
        %v428 = vand.u32 2147483647, %v364
        %v429 = vld [vmem:[%s244] sm:$0xff]
        %v430 = vld [vmem:[%s244 + $0x8] sm:$0xff]
        %v431 = vld [vmem:[%s244 + $0x10] sm:$0xff]
        %v432 = vld [vmem:[%s244 + $0x18] sm:$0xff]
        %v433 = vld [vmem:[%s244 + $0x20] sm:$0xff]
        %v434 = vld [vmem:[%s244 + $0x28] sm:$0xff]
        %v435 = vld [vmem:[%s244 + $0x30] sm:$0xff]
        %v436 = vld [vmem:[%s244 + $0x38] sm:$0xff]
        %v437 = vld [vmem:[%s244 + $0x40] sm:$0xff]
        %v438 = vld [vmem:[%s244 + $0x48] sm:$0xff]
        %v439 = vld [vmem:[%s244 + $0x50] sm:$0xff]
        %v440 = vld [vmem:[%s244 + $0x58] sm:$0xff]
        %v441 = vld [vmem:[%s244 + $0x60] sm:$0xff]
        %v442 = vld [vmem:[%s244 + $0x68] sm:$0xff]
        %v443 = vld [vmem:[%s244 + $0x70] sm:$0xff]
        %v444 = vld [vmem:[%s244 + $0x78] sm:$0xff]
        %v445 = vld [vmem:[%s244 + $0x80] sm:$0xff]
        %v446 = vld [vmem:[%s244 + $0x88] sm:$0xff]
        %v447 = vld [vmem:[%s244 + $0x90] sm:$0xff]
        %v448 = vld [vmem:[%s244 + $0x98] sm:$0xff]
        %v449 = vld [vmem:[%s244 + $0xa0] sm:$0xff]
        %v450 = vld [vmem:[%s244 + $0xa8] sm:$0xff]
        %v451 = vld [vmem:[%s244 + $0xb0] sm:$0xff]
        %v452 = vld [vmem:[%s244 + $0xb8] sm:$0xff]
        %v453 = vld [vmem:[%s244 + $0xc0] sm:$0xff]
        %v454 = vld [vmem:[%s244 + $0xc8] sm:$0xff]
        %v455 = vld [vmem:[%s244 + $0xd0] sm:$0xff]
        %v456 = vld [vmem:[%s244 + $0xd8] sm:$0xff]
        %v457 = vld [vmem:[%s244 + $0xe0] sm:$0xff]
        %v458 = vld [vmem:[%s244 + $0xe8] sm:$0xff]
        %v459 = vld [vmem:[%s244 + $0xf0] sm:$0xff]
        %v460 = vld [vmem:[%s244 + $0xf8] sm:$0xff]
        %v461 = vld [vmem:[%s244 + $0x100] sm:$0xff]
        %v462 = vld [vmem:[%s244 + $0x108] sm:$0xff]
        %v463 = vld [vmem:[%s244 + $0x110] sm:$0xff]
        %v464 = vld [vmem:[%s244 + $0x118] sm:$0xff]
        %v465 = vld [vmem:[%s244 + $0x120] sm:$0xff]
        %v466 = vld [vmem:[%s244 + $0x128] sm:$0xff]
        %v467 = vld [vmem:[%s244 + $0x130] sm:$0xff]
        %v468 = vld [vmem:[%s244 + $0x138] sm:$0xff]
        %v469 = vld [vmem:[%s244 + $0x140] sm:$0xff]
        %v470 = vld [vmem:[%s244 + $0x148] sm:$0xff]
        %v471 = vld [vmem:[%s244 + $0x150] sm:$0xff]
        %v472 = vld [vmem:[%s244 + $0x158] sm:$0xff]
        %v473 = vld [vmem:[%s244 + $0x160] sm:$0xff]
        %v474 = vld [vmem:[%s244 + $0x168] sm:$0xff]
        %v475 = vld [vmem:[%s244 + $0x170] sm:$0xff]
        %v476 = vld [vmem:[%s244 + $0x178] sm:$0xff]
        %v477 = vld [vmem:[%s244 + $0x180] sm:$0xff]
        %v478 = vld [vmem:[%s244 + $0x188] sm:$0xff]
        %v479 = vld [vmem:[%s244 + $0x190] sm:$0xff]
        %v480 = vld [vmem:[%s244 + $0x198] sm:$0xff]
        %v481 = vld [vmem:[%s244 + $0x1a0] sm:$0xff]
        %v482 = vld [vmem:[%s244 + $0x1a8] sm:$0xff]
        %v483 = vld [vmem:[%s244 + $0x1b0] sm:$0xff]
        %v484 = vld [vmem:[%s244 + $0x1b8] sm:$0xff]
        %v485 = vld [vmem:[%s244 + $0x1c0] sm:$0xff]
        %v486 = vld [vmem:[%s244 + $0x1c8] sm:$0xff]
        %v487 = vld [vmem:[%s244 + $0x1d0] sm:$0xff]
        %v488 = vld [vmem:[%s244 + $0x1d8] sm:$0xff]
        %v489 = vld [vmem:[%s244 + $0x1e0] sm:$0xff]
        %v490 = vld [vmem:[%s244 + $0x1e8] sm:$0xff]
        %v491 = vld [vmem:[%s244 + $0x1f0] sm:$0xff]
        %v492 = vld [vmem:[%s244 + $0x1f8] sm:$0xff]
        %v493 = vand.u32 2147483647, %v429
        %v494 = vand.u32 2147483647, %v430
        %v495 = vand.u32 2147483647, %v431
        %v496 = vand.u32 2147483647, %v432
        %v497 = vand.u32 2147483647, %v433
        %v498 = vand.u32 2147483647, %v434
        %v499 = vand.u32 2147483647, %v435
        %v500 = vand.u32 2147483647, %v436
        %v501 = vand.u32 2147483647, %v437
        %v502 = vand.u32 2147483647, %v438
        %v503 = vand.u32 2147483647, %v439
        %v504 = vand.u32 2147483647, %v440
        %v505 = vand.u32 2147483647, %v441
        %v506 = vand.u32 2147483647, %v442
        %v507 = vand.u32 2147483647, %v443
        %v508 = vand.u32 2147483647, %v444
        %v509 = vand.u32 2147483647, %v445
        %v510 = vand.u32 2147483647, %v446
        %v511 = vand.u32 2147483647, %v447
        %v512 = vand.u32 2147483647, %v448
        %v513 = vand.u32 2147483647, %v449
        %v514 = vand.u32 2147483647, %v450
        %v515 = vand.u32 2147483647, %v451
        %v516 = vand.u32 2147483647, %v452
        %v517 = vand.u32 2147483647, %v453
        %v518 = vand.u32 2147483647, %v454
        %v519 = vand.u32 2147483647, %v455
        %v520 = vand.u32 2147483647, %v456
        %v521 = vand.u32 2147483647, %v457
        %v522 = vand.u32 2147483647, %v458
        %v523 = vand.u32 2147483647, %v459
        %v524 = vand.u32 2147483647, %v460
        %v525 = vand.u32 2147483647, %v461
        %v526 = vand.u32 2147483647, %v462
        %v527 = vand.u32 2147483647, %v463
        %v528 = vand.u32 2147483647, %v464
        %v529 = vand.u32 2147483647, %v465
        %v530 = vand.u32 2147483647, %v466
        %v531 = vand.u32 2147483647, %v467
        %v532 = vand.u32 2147483647, %v468
        %v533 = vand.u32 2147483647, %v469
        %v534 = vand.u32 2147483647, %v470
        %v535 = vand.u32 2147483647, %v471
        %v536 = vand.u32 2147483647, %v472
        %v537 = vand.u32 2147483647, %v473
        %v538 = vand.u32 2147483647, %v474
        %v539 = vand.u32 2147483647, %v475
        %v540 = vand.u32 2147483647, %v476
        %v541 = vand.u32 2147483647, %v477
        %v542 = vand.u32 2147483647, %v478
        %v543 = vand.u32 2147483647, %v479
        %v544 = vand.u32 2147483647, %v480
        %v545 = vand.u32 2147483647, %v481
        %v546 = vand.u32 2147483647, %v482
        %v547 = vand.u32 2147483647, %v483
        %v548 = vand.u32 2147483647, %v484
        %v549 = vand.u32 2147483647, %v485
        %v550 = vand.u32 2147483647, %v486
        %v551 = vand.u32 2147483647, %v487
        %v552 = vand.u32 2147483647, %v488
        %v553 = vand.u32 2147483647, %v489
        %v554 = vand.u32 2147483647, %v490
        %v555 = vand.u32 2147483647, %v491
        %v556 = vand.u32 2147483647, %v492
        %v557 = vmax.f32 %v365, %v493
        %v558 = vmax.f32 %v366, %v494
        %v559 = vmax.f32 %v367, %v495
        %v560 = vmax.f32 %v368, %v496
        %v561 = vmax.f32 %v369, %v497
        %v562 = vmax.f32 %v370, %v498
        %v563 = vmax.f32 %v371, %v499
        %v564 = vmax.f32 %v372, %v500
        %v565 = vmax.f32 %v373, %v501
        %v566 = vmax.f32 %v374, %v502
        %v567 = vmax.f32 %v375, %v503
        %v568 = vmax.f32 %v376, %v504
        %v569 = vmax.f32 %v377, %v505
        %v570 = vmax.f32 %v378, %v506
        %v571 = vmax.f32 %v379, %v507
        %v572 = vmax.f32 %v380, %v508
        %v573 = vmax.f32 %v381, %v509
        %v574 = vmax.f32 %v382, %v510
        %v575 = vmax.f32 %v383, %v511
        %v576 = vmax.f32 %v384, %v512
        %v577 = vmax.f32 %v385, %v513
        %v578 = vmax.f32 %v386, %v514
        %v579 = vmax.f32 %v387, %v515
        %v580 = vmax.f32 %v388, %v516
        %v581 = vmax.f32 %v389, %v517
        %v582 = vmax.f32 %v390, %v518
        %v583 = vmax.f32 %v391, %v519
        %v584 = vmax.f32 %v392, %v520
        %v585 = vmax.f32 %v393, %v521
        %v586 = vmax.f32 %v394, %v522
        %v587 = vmax.f32 %v395, %v523
        %v588 = vmax.f32 %v396, %v524
        %v589 = vmax.f32 %v397, %v525
        %v590 = vmax.f32 %v398, %v526
        %v591 = vmax.f32 %v399, %v527
        %v592 = vmax.f32 %v400, %v528
        %v593 = vmax.f32 %v401, %v529
        %v594 = vmax.f32 %v402, %v530
        %v595 = vmax.f32 %v403, %v531
        %v596 = vmax.f32 %v404, %v532
        %v597 = vmax.f32 %v405, %v533
        %v598 = vmax.f32 %v406, %v534
        %v599 = vmax.f32 %v407, %v535
        %v600 = vmax.f32 %v408, %v536
        %v601 = vmax.f32 %v409, %v537
        %v602 = vmax.f32 %v410, %v538
        %v603 = vmax.f32 %v411, %v539
        %v604 = vmax.f32 %v412, %v540
        %v605 = vmax.f32 %v413, %v541
        %v606 = vmax.f32 %v414, %v542
        %v607 = vmax.f32 %v415, %v543
        %v608 = vmax.f32 %v416, %v544
        %v609 = vmax.f32 %v417, %v545
        %v610 = vmax.f32 %v418, %v546
        %v611 = vmax.f32 %v419, %v547
        %v612 = vmax.f32 %v420, %v548
        %v613 = vmax.f32 %v421, %v549
        %v614 = vmax.f32 %v422, %v550
        %v615 = vmax.f32 %v423, %v551
        %v616 = vmax.f32 %v424, %v552
        %v617 = vmax.f32 %v425, %v553
        %v618 = vmax.f32 %v426, %v554
        %v619 = vmax.f32 %v427, %v555
        %v620 = vmax.f32 %v428, %v556
        %v621 = vld [vmem:[#allocation2] sm:$0x3]
        %v622 = vadd.f32 %v557, %v559
        %v623 = vadd.f32 %v622, %v561
        %v624 = vadd.f32 %v623, %v563
        %v625 = vadd.f32 %v624, %v565
        %v626 = vadd.f32 %v625, %v567
        %v627 = vadd.f32 %v626, %v569
        %v628 = vadd.f32 %v627, %v571
        %v629 = vadd.f32 %v628, %v573
        %v630 = vadd.f32 %v629, %v575
        %v631 = vadd.f32 %v630, %v577
        %v632 = vadd.f32 %v631, %v579
        %v633 = vadd.f32 %v632, %v581
        %v634 = vadd.f32 %v633, %v583
        %v635 = vadd.f32 %v634, %v585
        %v636 = vadd.f32 %v635, %v587
        %v637 = vadd.f32 %v636, %v589
        %v638 = vadd.f32 %v637, %v591
        %v639 = vadd.f32 %v638, %v593
        %v640 = vadd.f32 %v639, %v595
        %v641 = vadd.f32 %v640, %v597
        %v642 = vadd.f32 %v641, %v599
        %v643 = vadd.f32 %v642, %v601
        %v644 = vadd.f32 %v643, %v603
        %v645 = vadd.f32 %v644, %v605
        %v646 = vadd.f32 %v645, %v607
        %v647 = vadd.f32 %v646, %v609
        %v648 = vadd.f32 %v647, %v611
        %v649 = vadd.f32 %v648, %v613
        %v650 = vadd.f32 %v649, %v615
        %v651 = vadd.f32 %v650, %v617
        %v652 = vadd.f32 %v651, %v619
        %v653 = vrot.slane %v652, 4
        %v654 = vadd.f32 %v652, %v653
        %v655 = vrot.slane %v654, 2
        %v656 = vadd.f32 %v654, %v655
        %v657 = vrot.slane %v656, 1
        %v658 = vadd.f32 %v656, %v657
        %v659 = vadd.f32 %v558, %v560
        %v660 = vadd.f32 %v659, %v562
        %v661 = vadd.f32 %v660, %v564
        %v662 = vadd.f32 %v661, %v566
        %v663 = vadd.f32 %v662, %v568
        %v664 = vadd.f32 %v663, %v570
        %v665 = vadd.f32 %v664, %v572
        %v666 = vadd.f32 %v665, %v574
        %v667 = vadd.f32 %v666, %v576
        %v668 = vadd.f32 %v667, %v578
        %v669 = vadd.f32 %v668, %v580
        %v670 = vadd.f32 %v669, %v582
        %v671 = vadd.f32 %v670, %v584
        %v672 = vadd.f32 %v671, %v586
        %v673 = vadd.f32 %v672, %v588
        %v674 = vadd.f32 %v673, %v590
        %v675 = vadd.f32 %v674, %v592
        %v676 = vadd.f32 %v675, %v594
        %v677 = vadd.f32 %v676, %v596
        %v678 = vadd.f32 %v677, %v598
        %v679 = vadd.f32 %v678, %v600
        %v680 = vadd.f32 %v679, %v602
        %v681 = vadd.f32 %v680, %v604
        %v682 = vadd.f32 %v681, %v606
        %v683 = vadd.f32 %v682, %v608
        %v684 = vadd.f32 %v683, %v610
        %v685 = vadd.f32 %v684, %v612
        %v686 = vadd.f32 %v685, %v614
        %v687 = vadd.f32 %v686, %v616
        %v688 = vadd.f32 %v687, %v618
        %v689 = vadd.f32 %v688, %v620
        %v690 = vrot.slane %v689, 4
        %v691 = vadd.f32 %v689, %v690
        %v692 = vrot.slane %v691, 2
        %v693 = vadd.f32 %v691, %v692
        %v694 = vrot.slane %v693, 1
        %v695 = vadd.f32 %v693, %v694
        %v698 = vcombine.low %v658, %v695
        %v700 = vunpack.c.l.s4 1966171168
        %v701 = vunpack.c.0.s8 %v700
        %v702 = vlaneseq
        %v703 = vshrl.u32 %v702, 7
        %v704 = vsub.s32 %v701, %v703
        %v705 = vrot.slane %v698, %v704
        %v707 = vunpack.c.l.s4 1966171168
        %v708 = vunpack.c.0.s8 %v707
        %v709 = vlaneseq
        %v710 = vshrl.u32 %v709, 7
        %v711 = vsub.s32 %v708, %v710
        %v712 = vrot.slane %v705, %v711
        %v714 = vadd.f32 %v621, %v712
        %v715 = vlaneseq
        %vm716 = vcmp.ge.s32.totalorder %v715, 0
        %vm717 = vcmp.lt.s32.totalorder %v715, 256
        %vm718 = vmand %vm716, %vm717
        %719 = vst.msk [vmem:[#allocation2] sm:$0x3] %vm718, %v714
        %p720 = scmp.eq.s32.totalorder %s28, 1
        // Predicated region
        $region49: #{tpu_custom_call.1} parent=31 // pred_check
          %p721 = pneg %p720
        $region50: #{tpu_custom_call.1} parent=31 // pred_check_branch
          %723 = sbr.rel (%p721) target = $region52
        $region51: #{tpu_custom_call.1} parent=31 // pred_region
          %v724 = vld [vmem:[%s253] sm:$0x3]
          %v725 = vld [vmem:[#allocation2] sm:$0x3]
          %v726 = vmax.f32 %v725, 1e-30
          %v727 = vrcp.pop %v726
          %v728 = vmul.f32 %v724, %v727
          %729 = vst.msk [vmem:[%s285] sm:$0x3] %vm718, %v728
        $region52: #{tpu_custom_call.1} parent=31 // pred_fallthru
          _
        %s730 = sand.u32 %s125, 1
        %s731 = scalar_lea.sflag [#allocation5], %s730
        %s732 = sand.u32 %s125, 1
        %s733 = smul.addr %s732, 2
        %s734 = scalar_lea.vmem [#allocation9], %s733
        // Predicated region
        $region53: #{tpu_custom_call.1} parent=31 // pred_check
          %p735 = pneg %p135
        $region54: #{tpu_custom_call.1} parent=31 // pred_check_branch
          %737 = sbr.rel (%p735) target = $region56
        $region55: #{tpu_custom_call.1} parent=31 // pred_region
          %s738 = smul.u32 2, %s27
          %s740 = ssub.s32 32, 32
          %741 = vsyncadd %s731, %s740
          %s742 = smul.addr %s738, 16
          %s743 = scalar_lea.hbm %s3, %s742
          %s745 = sshll.u32 %s734, 4
          %s746 = int_to_ptr.vmem [resolvable:$true] %s745
          %748 = dma.vmem_to_hbm [thread:$0]  %s746, 32, %s743, %s731
        $region56: #{tpu_custom_call.1} parent=31 // pred_fallthru
          _
      $region32: #{tpu_custom_call.1} parent=5 // pred_fallthru
        _
      %p749 = scmp.le.s32.totalorder 2, %s18
      // Predicated region
      $region57: #{tpu_custom_call.1} parent=5 // pred_check
        %p750 = pneg %p749
      $region58: #{tpu_custom_call.1} parent=5 // pred_check_branch
        %752 = sbr.rel (%p750) target = $region60
      $region59: #{tpu_custom_call.1} parent=5 // pred_region
        %s753 = ssub.s32 %s18, 2
        // Predicated region
        $region61: #{tpu_custom_call.1} parent=59 // pred_check
          %p754 = pneg %p141
        $region62: #{tpu_custom_call.1} parent=59 // pred_check_branch
          %756 = sbr.rel (%p754) target = $region64
        $region63: #{tpu_custom_call.1} parent=59 // pred_region
          %s757 = sand.u32 %s126, 1
          %s758 = scalar_lea.sflag [#allocation5], %s757
          %s759 = sand.u32 %s126, 1
          %s760 = smul.addr %s759, 2
          %s761 = scalar_lea.vmem [#allocation9], %s760
          %762 = dma.done %s758, 32
        $region64: #{tpu_custom_call.1} parent=59 // pred_fallthru
          _
      $region60: #{tpu_custom_call.1} parent=5 // pred_fallthru
        _
    $region6: #{tpu_custom_call.1} parent=1 // loop_footer
      %s22 = sadd.s32 1, %s18
    $region7: #{tpu_custom_call.1} parent=1 // loop_footer_branch
      %17 = sbr.rel target = $region3
    $region8: #{tpu_custom_call.1} parent=1 // loop_exit
      _
    %763 = vsyncpa [#allocation4], 1
    %s764 = scalar_lea.sflag [#allocation4], 1
    %765 = vsyncpa %s764, 1
    %766 = vsyncpa [#allocation7], 1
    %s767 = scalar_lea.sflag [#allocation7], 1
    %768 = vsyncpa %s767, 1
    %769 = vsyncpa [#allocation5], 1
    %s770 = scalar_lea.sflag [#allocation5], 1
    %771 = vsyncpa %s770, 1

</llo_original>
